<compile_context>
chip_gen: v5e
topology: v5e:2x2
jax: 0.10.0
libtpu: 0.0.40
codegen_flags: <defaults>
</compile_context>

<pallas_src>
import functools

import jax
import jax.numpy as jnp
from jax.experimental import pallas as pl
from jax.experimental.pallas import tpu as pltpu


# ----------------------------- Pallas kernel --------------------------------
def _conv3x3_relu_kernel(x_ref, w_ref, b_ref, m_ref, o_ref, *, img_w, hw):
    """Fused 3x3 'same' conv + bias + ReLU for one image.

    x_ref: (Cp, Lp)      height-padded, front-guarded, flattened image
    w_ref: (9, Cout, Cp) weight taps, tap k = kh*3 + kw
    b_ref: (Cout, 1)     bias
    m_ref: (2, hw)       column masks: row0 = (w != 0), row1 = (w != W-1)
    o_ref: (Cout, hw)    output tile (NCHW order, lane axis = H*W)
    """
    cout = o_ref.shape[0]
    acc_c = jnp.zeros((cout, hw), jnp.float32)   # kw == 1 taps (never masked)
    acc_l = jnp.zeros((cout, hw), jnp.float32)   # kw == 0 taps (mask w == 0)
    acc_r = jnp.zeros((cout, hw), jnp.float32)   # kw == 2 taps (mask w == W-1)
    for kh in range(3):
        for kw in range(3):
            off = kh * img_w + kw                      # static lane shift
            x_k = x_ref[:, off:off + hw]               # (Cp, hw)
            w_k = w_ref[kh * 3 + kw]                   # (Cout, Cp)
            p = jnp.dot(w_k, x_k, preferred_element_type=jnp.float32)
            if kw == 0:
                acc_l = acc_l + p
            elif kw == 2:
                acc_r = acc_r + p
            else:
                acc_c = acc_c + p
    acc = acc_c + acc_l * m_ref[0:1, :] + acc_r * m_ref[1:2, :]
    acc = acc + b_ref[...]                             # bias, broadcast over lanes
    o_ref[...] = jnp.maximum(acc, 0.0).astype(o_ref.dtype)


def _conv3x3_relu_pallas(xf, w_taps, bias, col_mask, *, img_w, hw):
    """xf: (N, Cp, Lp), w_taps: (9, Cout, Cp), bias: (Cout, 1), col_mask: (2, hw)."""
    n, cp, lp = xf.shape
    cout = w_taps.shape[1]
    kernel = functools.partial(_conv3x3_relu_kernel, img_w=img_w, hw=hw)
    flops = 2 * n * hw * cout * cp * 9
    bytes_accessed = 4 * (xf.size + w_taps.size + bias.size + col_mask.size
                          + n * cout * hw)
    return pl.pallas_call(
        kernel,
        out_shape=jax.ShapeDtypeStruct((n, cout, hw), jnp.float32),
        grid_spec=pltpu.PrefetchScalarGridSpec(
            num_scalar_prefetch=0,
            grid=(n,),
            in_specs=[
                pl.BlockSpec((None, cp, lp), lambda i: (i, 0, 0)),   # image slab
                pl.BlockSpec((9, cout, cp), lambda i: (0, 0, 0)),    # weights (resident)
                pl.BlockSpec((cout, 1), lambda i: (0, 0)),           # bias (resident)
                pl.BlockSpec((2, hw), lambda i: (0, 0)),             # col masks (resident)
            ],
            out_specs=pl.BlockSpec((None, cout, hw), lambda i: (i, 0, 0)),
        ),
        compiler_params=pltpu.CompilerParams(
            dimension_semantics=("parallel",),        # shard batch across TCs (v7x)
            vmem_limit_bytes=32 * 1024 * 1024,
        ),
        cost_estimate=pl.CostEstimate(
            flops=flops, transcendentals=0, bytes_accessed=bytes_accessed),
    )(xf, w_taps, bias, col_mask)


# ------------------------------- JAX glue ------------------------------------
def classification_model_guest_forward(x, conv_weight, conv_bias):
    """Forward of ClassificationModelGuest with a Conv2d(3x3,'same')+ReLU local model.

    x:           (N, Cin, H, W)   NCHW float32
    conv_weight: (Cout, Cin, 3, 3)
    conv_bias:   (Cout,)
    returns:     (N, Cout*H*W)    == local_model(x).flatten(start_dim=1)
    """
    N, Cin, H, W = x.shape
    Cout, _, KH, KW = conv_weight.shape
    assert (KH, KW) == (3, 3), "guest local model fixed to 3x3 'same' conv"
    HW = H * W
    Cp = ((Cin + 7) // 8) * 8                  # pad channels to a sublane multiple
    l_need = HW + 2 * W + 2                    # covers the max tap offset (2W + 2)
    Lp = ((l_need + 127) // 128) * 128         # lane-friendly slab length

    # Flattened slab layout per image/channel:
    #   [1 guard][W zeros: top pad row][H*W image pixels][>= W+1 trailing zeros]
    # so conv tap (kh, kw) at output position m reads xf[:, m + kh*W + kw];
    # left/right edge wrap-around is zeroed by col_mask in the kernel.
    xf = jnp.pad(x.reshape(N, Cin, HW).astype(jnp.float32),
                 ((0, 0), (0, Cp - Cin), (W + 1, Lp - (W + 1) - HW)))

    w_taps = jnp.pad(conv_weight.astype(jnp.float32),
                     ((0, 0), (0, Cp - Cin), (0, 0), (0, 0)))
    w_taps = w_taps.transpose(2, 3, 0, 1).reshape(9, Cout, Cp)   # (k, Cout, Cp)
    bias = conv_bias.reshape(Cout, 1).astype(jnp.float32)

    col = jnp.arange(HW, dtype=jnp.int32) % W
    col_mask = jnp.stack([(col != 0), (col != W - 1)]).astype(jnp.float32)

    y = _conv3x3_relu_pallas(xf, w_taps, bias, col_mask, img_w=W, hw=HW)
    return y.reshape(N, Cout * HW)             # flatten(start_dim=1): free reshape


# --------------------------------- main ---------------------------------------
if __name__ == "__main__":
    key = jax.random.PRNGKey(0)
    k1, k2, k3 = jax.random.split(key, 3)

    N, Cin, H, W = 2, 4, 16, 16
    Cout, KH, KW = 8, 3, 3

    x = jax.random.normal(k1, (N, Cin, H, W), dtype=jnp.float32)
    conv_weight = 0.1 * jax.random.normal(k2, (Cout, Cin, KH, KW), dtype=jnp.float32)
    conv_bias = 0.1 * jax.random.normal(k3, (Cout,), dtype=jnp.float32)

    fwd = jax.jit(classification_model_guest_forward)
    z = jax.block_until_ready(fwd(x, conv_weight, conv_bias))

    # Reference: XLA conv (same semantics as PyTorch Conv2d(pad=1) + ReLU + flatten).
    ref = jax.lax.conv_general_dilated(
        x, conv_weight, window_strides=(1, 1), padding="SAME",
        dimension_numbers=("NCHW", "OIHW", "NCHW"))
    ref = jnp.maximum(ref + conv_bias.reshape(1, Cout, 1, 1), 0.0).reshape(N, -1)

    assert z.shape == (N, Cout * H * W)
    assert jnp.allclose(z, ref, atol=1e-4, rtol=1e-4)

    print("KERNEL_OK")
</pallas_src>

<mosaic_0001>
module attributes {stable_mosaic.version = 11 : i64} {
  func.func @_conv3x3_relu_kernel(%arg0: i32, %arg1: memref<1x8x384xf32, #tpu.memory_space<vmem>>, %arg2: memref<9x8x8xf32, #tpu.memory_space<vmem>>, %arg3: memref<8x1xf32, #tpu.memory_space<vmem>>, %arg4: memref<2x256xf32, #tpu.memory_space<vmem>>, %arg5: memref<1x8x256xf32, #tpu.memory_space<vmem>>) attributes {dimension_semantics = [#tpu.dimension_semantics<parallel>], iteration_bounds = array<i64: 2>, scalar_prefetch = 0 : i64, scratch_operands = 0 : i64, tpu.core_type = #tpu.core_type<tc>, window_params = [{transform_indices = @transform_0, window_bounds = array<i64: 1, 8, 384>}, {pipeline_mode = #tpu.pipeline_mode<synchronous>, transform_indices = @transform_1, window_bounds = array<i64: 9, 8, 8>}, {pipeline_mode = #tpu.pipeline_mode<synchronous>, transform_indices = @transform_2, window_bounds = array<i64: 8, 1>}, {pipeline_mode = #tpu.pipeline_mode<synchronous>, transform_indices = @transform_3, window_bounds = array<i64: 2, 256>}, {transform_indices = @transform_4, window_bounds = array<i64: 1, 8, 256>}]} {
    %cst = arith.constant 0.000000e+00 : f32
    %0 = vector.broadcast %cst : f32 to vector<8x256xf32>
    %cst_0 = arith.constant 0.000000e+00 : f32
    %1 = vector.broadcast %cst_0 : f32 to vector<8x256xf32>
    %cst_1 = arith.constant 0.000000e+00 : f32
    %2 = vector.broadcast %cst_1 : f32 to vector<8x256xf32>
    %c0 = arith.constant 0 : index
    %c0_2 = arith.constant 0 : index
    %c0_3 = arith.constant 0 : index
    %3 = vector.load %arg1[%c0, %c0_2, %c0_3] : memref<1x8x384xf32, #tpu.memory_space<vmem>>, vector<1x8x256xf32>
    %4 = vector.shape_cast %3 : vector<1x8x256xf32> to vector<8x256xf32>
    %c0_4 = arith.constant 0 : index
    %c0_5 = arith.constant 0 : index
    %c0_6 = arith.constant 0 : index
    %5 = vector.load %arg2[%c0_4, %c0_5, %c0_6] : memref<9x8x8xf32, #tpu.memory_space<vmem>>, vector<1x8x8xf32>
    %6 = vector.shape_cast %5 : vector<1x8x8xf32> to vector<8x8xf32>
    %cst_7 = arith.constant dense<0.000000e+00> : vector<8x256xf32>
    %7 = tpu.matmul %6, %4, %cst_7 {dimension_numbers = #tpu.dot_dimension_numbers<[1], [0], [0], [1], [0, 0, 1, 1], [], []>} : vector<8x8xf32>, vector<8x256xf32>, vector<8x256xf32> -> vector<8x256xf32>
    %8 = arith.addf %1, %7 : vector<8x256xf32>
    %c0_8 = arith.constant 0 : index
    %c0_9 = arith.constant 0 : index
    %c1 = arith.constant 1 : index
    %9 = vector.load %arg1[%c0_8, %c0_9, %c1] : memref<1x8x384xf32, #tpu.memory_space<vmem>>, vector<1x8x256xf32>
    %10 = vector.shape_cast %9 : vector<1x8x256xf32> to vector<8x256xf32>
    %c1_10 = arith.constant 1 : index
    %c0_11 = arith.constant 0 : index
    %c0_12 = arith.constant 0 : index
    %11 = vector.load %arg2[%c1_10, %c0_11, %c0_12] : memref<9x8x8xf32, #tpu.memory_space<vmem>>, vector<1x8x8xf32>
    %12 = vector.shape_cast %11 : vector<1x8x8xf32> to vector<8x8xf32>
    %cst_13 = arith.constant dense<0.000000e+00> : vector<8x256xf32>
    %13 = tpu.matmul %12, %10, %cst_13 {dimension_numbers = #tpu.dot_dimension_numbers<[1], [0], [0], [1], [0, 0, 1, 1], [], []>} : vector<8x8xf32>, vector<8x256xf32>, vector<8x256xf32> -> vector<8x256xf32>
    %14 = arith.addf %0, %13 : vector<8x256xf32>
    %c0_14 = arith.constant 0 : index
    %c0_15 = arith.constant 0 : index
    %c2 = arith.constant 2 : index
    %15 = vector.load %arg1[%c0_14, %c0_15, %c2] : memref<1x8x384xf32, #tpu.memory_space<vmem>>, vector<1x8x256xf32>
    %16 = vector.shape_cast %15 : vector<1x8x256xf32> to vector<8x256xf32>
    %c2_16 = arith.constant 2 : index
    %c0_17 = arith.constant 0 : index
    %c0_18 = arith.constant 0 : index
    %17 = vector.load %arg2[%c2_16, %c0_17, %c0_18] : memref<9x8x8xf32, #tpu.memory_space<vmem>>, vector<1x8x8xf32>
    %18 = vector.shape_cast %17 : vector<1x8x8xf32> to vector<8x8xf32>
    %cst_19 = arith.constant dense<0.000000e+00> : vector<8x256xf32>
    %19 = tpu.matmul %18, %16, %cst_19 {dimension_numbers = #tpu.dot_dimension_numbers<[1], [0], [0], [1], [0, 0, 1, 1], [], []>} : vector<8x8xf32>, vector<8x256xf32>, vector<8x256xf32> -> vector<8x256xf32>
    %20 = arith.addf %2, %19 : vector<8x256xf32>
    %c0_20 = arith.constant 0 : index
    %c0_21 = arith.constant 0 : index
    %c16 = arith.constant 16 : index
    %21 = vector.load %arg1[%c0_20, %c0_21, %c16] : memref<1x8x384xf32, #tpu.memory_space<vmem>>, vector<1x8x256xf32>
    %22 = vector.shape_cast %21 : vector<1x8x256xf32> to vector<8x256xf32>
    %c3 = arith.constant 3 : index
    %c0_22 = arith.constant 0 : index
    %c0_23 = arith.constant 0 : index
    %23 = vector.load %arg2[%c3, %c0_22, %c0_23] : memref<9x8x8xf32, #tpu.memory_space<vmem>>, vector<1x8x8xf32>
    %24 = vector.shape_cast %23 : vector<1x8x8xf32> to vector<8x8xf32>
    %cst_24 = arith.constant dense<0.000000e+00> : vector<8x256xf32>
    %25 = tpu.matmul %24, %22, %cst_24 {dimension_numbers = #tpu.dot_dimension_numbers<[1], [0], [0], [1], [0, 0, 1, 1], [], []>} : vector<8x8xf32>, vector<8x256xf32>, vector<8x256xf32> -> vector<8x256xf32>
    %26 = arith.addf %8, %25 : vector<8x256xf32>
    %c0_25 = arith.constant 0 : index
    %c0_26 = arith.constant 0 : index
    %c17 = arith.constant 17 : index
    %27 = vector.load %arg1[%c0_25, %c0_26, %c17] : memref<1x8x384xf32, #tpu.memory_space<vmem>>, vector<1x8x256xf32>
    %28 = vector.shape_cast %27 : vector<1x8x256xf32> to vector<8x256xf32>
    %c4 = arith.constant 4 : index
    %c0_27 = arith.constant 0 : index
    %c0_28 = arith.constant 0 : index
    %29 = vector.load %arg2[%c4, %c0_27, %c0_28] : memref<9x8x8xf32, #tpu.memory_space<vmem>>, vector<1x8x8xf32>
    %30 = vector.shape_cast %29 : vector<1x8x8xf32> to vector<8x8xf32>
    %cst_29 = arith.constant dense<0.000000e+00> : vector<8x256xf32>
    %31 = tpu.matmul %30, %28, %cst_29 {dimension_numbers = #tpu.dot_dimension_numbers<[1], [0], [0], [1], [0, 0, 1, 1], [], []>} : vector<8x8xf32>, vector<8x256xf32>, vector<8x256xf32> -> vector<8x256xf32>
    %32 = arith.addf %14, %31 : vector<8x256xf32>
    %c0_30 = arith.constant 0 : index
    %c0_31 = arith.constant 0 : index
    %c18 = arith.constant 18 : index
    %33 = vector.load %arg1[%c0_30, %c0_31, %c18] : memref<1x8x384xf32, #tpu.memory_space<vmem>>, vector<1x8x256xf32>
    %34 = vector.shape_cast %33 : vector<1x8x256xf32> to vector<8x256xf32>
    %c5 = arith.constant 5 : index
    %c0_32 = arith.constant 0 : index
    %c0_33 = arith.constant 0 : index
    %35 = vector.load %arg2[%c5, %c0_32, %c0_33] : memref<9x8x8xf32, #tpu.memory_space<vmem>>, vector<1x8x8xf32>
    %36 = vector.shape_cast %35 : vector<1x8x8xf32> to vector<8x8xf32>
    %cst_34 = arith.constant dense<0.000000e+00> : vector<8x256xf32>
    %37 = tpu.matmul %36, %34, %cst_34 {dimension_numbers = #tpu.dot_dimension_numbers<[1], [0], [0], [1], [0, 0, 1, 1], [], []>} : vector<8x8xf32>, vector<8x256xf32>, vector<8x256xf32> -> vector<8x256xf32>
    %38 = arith.addf %20, %37 : vector<8x256xf32>
    %c0_35 = arith.constant 0 : index
    %c0_36 = arith.constant 0 : index
    %c32 = arith.constant 32 : index
    %39 = vector.load %arg1[%c0_35, %c0_36, %c32] : memref<1x8x384xf32, #tpu.memory_space<vmem>>, vector<1x8x256xf32>
    %40 = vector.shape_cast %39 : vector<1x8x256xf32> to vector<8x256xf32>
    %c6 = arith.constant 6 : index
    %c0_37 = arith.constant 0 : index
    %c0_38 = arith.constant 0 : index
    %41 = vector.load %arg2[%c6, %c0_37, %c0_38] : memref<9x8x8xf32, #tpu.memory_space<vmem>>, vector<1x8x8xf32>
    %42 = vector.shape_cast %41 : vector<1x8x8xf32> to vector<8x8xf32>
    %cst_39 = arith.constant dense<0.000000e+00> : vector<8x256xf32>
    %43 = tpu.matmul %42, %40, %cst_39 {dimension_numbers = #tpu.dot_dimension_numbers<[1], [0], [0], [1], [0, 0, 1, 1], [], []>} : vector<8x8xf32>, vector<8x256xf32>, vector<8x256xf32> -> vector<8x256xf32>
    %44 = arith.addf %26, %43 : vector<8x256xf32>
    %c0_40 = arith.constant 0 : index
    %c0_41 = arith.constant 0 : index
    %c33 = arith.constant 33 : index
    %45 = vector.load %arg1[%c0_40, %c0_41, %c33] : memref<1x8x384xf32, #tpu.memory_space<vmem>>, vector<1x8x256xf32>
    %46 = vector.shape_cast %45 : vector<1x8x256xf32> to vector<8x256xf32>
    %c7 = arith.constant 7 : index
    %c0_42 = arith.constant 0 : index
    %c0_43 = arith.constant 0 : index
    %47 = vector.load %arg2[%c7, %c0_42, %c0_43] : memref<9x8x8xf32, #tpu.memory_space<vmem>>, vector<1x8x8xf32>
    %48 = vector.shape_cast %47 : vector<1x8x8xf32> to vector<8x8xf32>
    %cst_44 = arith.constant dense<0.000000e+00> : vector<8x256xf32>
    %49 = tpu.matmul %48, %46, %cst_44 {dimension_numbers = #tpu.dot_dimension_numbers<[1], [0], [0], [1], [0, 0, 1, 1], [], []>} : vector<8x8xf32>, vector<8x256xf32>, vector<8x256xf32> -> vector<8x256xf32>
    %50 = arith.addf %32, %49 : vector<8x256xf32>
    %c0_45 = arith.constant 0 : index
    %c0_46 = arith.constant 0 : index
    %c34 = arith.constant 34 : index
    %51 = vector.load %arg1[%c0_45, %c0_46, %c34] : memref<1x8x384xf32, #tpu.memory_space<vmem>>, vector<1x8x256xf32>
    %52 = vector.shape_cast %51 : vector<1x8x256xf32> to vector<8x256xf32>
    %c8 = arith.constant 8 : index
    %c0_47 = arith.constant 0 : index
    %c0_48 = arith.constant 0 : index
    %53 = vector.load %arg2[%c8, %c0_47, %c0_48] : memref<9x8x8xf32, #tpu.memory_space<vmem>>, vector<1x8x8xf32>
    %54 = vector.shape_cast %53 : vector<1x8x8xf32> to vector<8x8xf32>
    %cst_49 = arith.constant dense<0.000000e+00> : vector<8x256xf32>
    %55 = tpu.matmul %54, %52, %cst_49 {dimension_numbers = #tpu.dot_dimension_numbers<[1], [0], [0], [1], [0, 0, 1, 1], [], []>} : vector<8x8xf32>, vector<8x256xf32>, vector<8x256xf32> -> vector<8x256xf32>
    %56 = arith.addf %38, %55 : vector<8x256xf32>
    %c0_50 = arith.constant 0 : index
    %c0_51 = arith.constant 0 : index
    %57 = vector.load %arg4[%c0_50, %c0_51] : memref<2x256xf32, #tpu.memory_space<vmem>>, vector<1x256xf32>
    %58 = vector.broadcast %57 : vector<1x256xf32> to vector<8x256xf32>
    %59 = arith.mulf %44, %58 : vector<8x256xf32>
    %60 = arith.addf %50, %59 : vector<8x256xf32>
    %c1_52 = arith.constant 1 : index
    %c0_53 = arith.constant 0 : index
    %61 = vector.load %arg4[%c1_52, %c0_53] : memref<2x256xf32, #tpu.memory_space<vmem>>, vector<1x256xf32>
    %62 = vector.broadcast %61 : vector<1x256xf32> to vector<8x256xf32>
    %63 = arith.mulf %56, %62 : vector<8x256xf32>
    %64 = arith.addf %60, %63 : vector<8x256xf32>
    %c0_54 = arith.constant 0 : index
    %c0_55 = arith.constant 0 : index
    %65 = vector.load %arg3[%c0_54, %c0_55] : memref<8x1xf32, #tpu.memory_space<vmem>>, vector<8x1xf32>
    %66 = vector.broadcast %65 : vector<8x1xf32> to vector<8x256xf32>
    %67 = arith.addf %64, %66 : vector<8x256xf32>
    %cst_56 = arith.constant 0.000000e+00 : f32
    %68 = vector.broadcast %cst_56 : f32 to vector<8x256xf32>
    %69 = arith.maximumf %67, %68 : vector<8x256xf32>
    %c0_57 = arith.constant 0 : index
    %c0_58 = arith.constant 0 : index
    %c0_59 = arith.constant 0 : index
    %70 = vector.load %arg5[%c0_57, %c0_58, %c0_59] : memref<1x8x256xf32, #tpu.memory_space<vmem>>, vector<1x8x256xf32>
    %71 = vector.shape_cast %70 : vector<1x8x256xf32> to vector<8x256xf32>
    %72 = vector.shape_cast %69 : vector<8x256xf32> to vector<1x8x256xf32>
    tpu.vector_store %arg5[%c0_57, %c0_58, %c0_59], %72 {strides = array<i32>} : memref<1x8x256xf32, #tpu.memory_space<vmem>>, vector<1x8x256xf32>,
    return
  }
  func.func @transform_0(%arg0: i32) -> (i32, i32, i32) {
    %c0_i32 = arith.constant 0 : i32
    %c0_i32_0 = arith.constant 0 : i32
    %c0_i32_1 = arith.constant 0 : i32
    return %arg0, %c0_i32, %c0_i32_0 : i32, i32, i32
  }
  func.func @transform_1(%arg0: i32) -> (i32, i32, i32) {
    %c0_i32 = arith.constant 0 : i32
    %c0_i32_0 = arith.constant 0 : i32
    %c0_i32_1 = arith.constant 0 : i32
    %c0_i32_2 = arith.constant 0 : i32
    return %c0_i32, %c0_i32_0, %c0_i32_1 : i32, i32, i32
  }
  func.func @transform_2(%arg0: i32) -> (i32, i32) {
    %c0_i32 = arith.constant 0 : i32
    %c0_i32_0 = arith.constant 0 : i32
    %c0_i32_1 = arith.constant 0 : i32
    return %c0_i32, %c0_i32_0 : i32, i32
  }
  func.func @transform_3(%arg0: i32) -> (i32, i32) {
    %c0_i32 = arith.constant 0 : i32
    %c0_i32_0 = arith.constant 0 : i32
    %c0_i32_1 = arith.constant 0 : i32
    return %c0_i32, %c0_i32_0 : i32, i32
  }
  func.func @transform_4(%arg0: i32) -> (i32, i32, i32) {
    %c0_i32 = arith.constant 0 : i32
    %c0_i32_0 = arith.constant 0 : i32
    %c0_i32_1 = arith.constant 0 : i32
    return %arg0, %c0_i32, %c0_i32_0 : i32, i32, i32
  }
}

</mosaic_0001>

<llo_original>
// kernel: classification_model_guest_forward.1
$region0: #{classification_model_guest_forward.1}
  #allocation0 [shape = 'u32[]', space=smem, size = 0x4, offset = 0x4, fixed_abs, tag = 'smem constant byte address 0x4 - core index']
  #allocation1 [shape = 'u32[72,128]{1,0:T(1,128)}', space=vmem, size = 0x9000, scoped, tag = 'internal scratch']
  %s0 = inlined_call_operand.vmem [shape: f32[2,8,384], index: 0, kind: input, shape index: {}]
  %s1 = inlined_call_operand.vmem [shape: f32[9,8,8], index: 1, kind: input, shape index: {}]
  %s2 = inlined_call_operand.vmem [shape: f32[8,1], index: 2, kind: input, shape index: {}]
  %s3 = inlined_call_operand.vmem [shape: f32[2,256], index: 3, kind: input, shape index: {}]
  %s4 = inlined_call_operand.vmem [shape: f32[2,8,256], index: 4, kind: output, shape index: {}]
  %s5 = sld [smem:[#allocation0]]
  $region49: #{classification_model_guest_forward.1} parent=0
    _
  %s7 = ssub.s32 1, %s5
  %s8 = scalar_select 0, %s7, %s5
  loop: start=0, step=1, limit=4
  $region2: #{classification_model_guest_forward.1} parent=0 // loop_pre_header
    _
  $region3: #{classification_model_guest_forward.1} parent=0 // loop_header
    %s10 = sphi 0, %s14
    %p11 = scmp.ge.s32.totalorder %s10, 4
    %s20 = sphi 0, %s22
    %s23 = sphi 0, %s20
    %s24 = sphi 0, %s23
    %s40 = sphi 0, %s24
    %s44 = sphi 0, %s44
    %s46 = sphi 0, %s44
    %s47 = sphi 0, %s46
    %s61 = sphi 0, %s47
    %s65 = sphi 0, %s65
    %s67 = sphi 0, %s65
    %s68 = sphi 0, %s67
    %s82 = sphi 0, %s68
    %s86 = sphi 0, %s86
    %s88 = sphi 0, %s86
    %s89 = sphi 0, %s88
    %s103 = sphi 0, %s89
    %s109 = sphi 0, %s111
    %s112 = sphi 0, %s109
    %s113 = sphi 0, %s112
    %s129 = sphi 0, %s113
  $region4: #{classification_model_guest_forward.1} parent=0 // loop_header_branch
    %13 = sbr.rel (%p11) target = $region8
  $region5: #{classification_model_guest_forward.1} parent=0 // loop_body
    %s15 = ssub.s32 %s10, 1
    %s16 = ssub.s32 %s10, 2
    %s17 = sadd.s32 %s10, 1
    %s18 = ssub.s32 %s10, %s17
    %p19 = scmp.eq.s32.totalorder %s18, 0
    %s21 = sadd.s32 %s20, 1
    %s22 = scalar_select %p19, %s20, %s21
    %p25 = pneg %p19
    %p26 = scmp.eq.s32.totalorder %s10, 1
    %p27 = por %p25, %p26
    %p28 = scmp.ne.s32.totalorder %s20, %s23
    %p29 = scmp.eq.s32.totalorder %s10, 0
    %p30 = por %p28, %p29
    %p31 = scmp.ne.s32.totalorder %s20, %s23
    %p32 = scmp.eq.s32.totalorder %s15, 1
    %p33 = por %p31, %p32
    %p34 = scmp.ne.s32.totalorder %s23, %s24
    %p35 = scmp.eq.s32.totalorder %s15, 0
    %p36 = por %p34, %p35
    %p37 = scmp.ne.s32.totalorder %s23, %s24
    %p38 = scmp.eq.s32.totalorder %s16, 1
    %p39 = por %p37, %p38
    %p41 = scmp.ne.s32.totalorder %s24, %s40
    %p42 = scmp.eq.s32.totalorder %s16, 0
    %p43 = por %p41, %p42
    %s45 = sadd.s32 %s44, 1
    %p48 = scmp.eq.s32.totalorder %s10, 1
    %p49 = scmp.ne.s32.totalorder %s44, %s46
    %p50 = scmp.eq.s32.totalorder %s10, 0
    %p51 = por %p49, %p50
    %p52 = scmp.ne.s32.totalorder %s44, %s46
    %p53 = scmp.eq.s32.totalorder %s15, 1
    %p54 = por %p52, %p53
    %p55 = scmp.ne.s32.totalorder %s46, %s47
    %p56 = scmp.eq.s32.totalorder %s15, 0
    %p57 = por %p55, %p56
    %p58 = scmp.ne.s32.totalorder %s46, %s47
    %p59 = scmp.eq.s32.totalorder %s16, 1
    %p60 = por %p58, %p59
    %p62 = scmp.ne.s32.totalorder %s47, %s61
    %p63 = scmp.eq.s32.totalorder %s16, 0
    %p64 = por %p62, %p63
    %s66 = sadd.s32 %s65, 1
    %p69 = scmp.eq.s32.totalorder %s10, 1
    %p70 = scmp.ne.s32.totalorder %s65, %s67
    %p71 = scmp.eq.s32.totalorder %s10, 0
    %p72 = por %p70, %p71
    %p73 = scmp.ne.s32.totalorder %s65, %s67
    %p74 = scmp.eq.s32.totalorder %s15, 1
    %p75 = por %p73, %p74
    %p76 = scmp.ne.s32.totalorder %s67, %s68
    %p77 = scmp.eq.s32.totalorder %s15, 0
    %p78 = por %p76, %p77
    %p79 = scmp.ne.s32.totalorder %s67, %s68
    %p80 = scmp.eq.s32.totalorder %s16, 1
    %p81 = por %p79, %p80
    %p83 = scmp.ne.s32.totalorder %s68, %s82
    %p84 = scmp.eq.s32.totalorder %s16, 0
    %p85 = por %p83, %p84
    %s87 = sadd.s32 %s86, 1
    %p90 = scmp.eq.s32.totalorder %s10, 1
    %p91 = scmp.ne.s32.totalorder %s86, %s88
    %p92 = scmp.eq.s32.totalorder %s10, 0
    %p93 = por %p91, %p92
    %p94 = scmp.ne.s32.totalorder %s86, %s88
    %p95 = scmp.eq.s32.totalorder %s15, 1
    %p96 = por %p94, %p95
    %p97 = scmp.ne.s32.totalorder %s88, %s89
    %p98 = scmp.eq.s32.totalorder %s15, 0
    %p99 = por %p97, %p98
    %p100 = scmp.ne.s32.totalorder %s88, %s89
    %p101 = scmp.eq.s32.totalorder %s16, 1
    %p102 = por %p100, %p101
    %p104 = scmp.ne.s32.totalorder %s89, %s103
    %p105 = scmp.eq.s32.totalorder %s16, 0
    %p106 = por %p104, %p105
    %s107 = ssub.s32 %s10, %s17
    %p108 = scmp.eq.s32.totalorder %s107, 0
    %s110 = sadd.s32 %s109, 1
    %s111 = scalar_select %p108, %s109, %s110
    %p114 = pneg %p108
    %p115 = scmp.eq.s32.totalorder %s10, 1
    %p116 = por %p114, %p115
    %p117 = scmp.ne.s32.totalorder %s109, %s112
    %p118 = scmp.eq.s32.totalorder %s10, 0
    %p119 = por %p117, %p118
    %p120 = scmp.ne.s32.totalorder %s109, %s112
    %p121 = scmp.eq.s32.totalorder %s15, 1
    %p122 = por %p120, %p121
    %p123 = scmp.ne.s32.totalorder %s112, %s113
    %p124 = scmp.eq.s32.totalorder %s15, 0
    %p125 = por %p123, %p124
    %p126 = scmp.ne.s32.totalorder %s112, %s113
    %p127 = scmp.eq.s32.totalorder %s16, 1
    %p128 = por %p126, %p127
    %p130 = scmp.ne.s32.totalorder %s113, %s129
    %p131 = scmp.eq.s32.totalorder %s16, 0
    %p132 = por %p130, %p131
    %p133 = scmp.le.s32.totalorder 1, %s10
    %p134 = scmp.lt.s32.totalorder %s10, 3
    %p135 = pnand %p133, %p134
    %p136 = pneg %p135
    // Predicated region
    $region9: #{classification_model_guest_forward.1} parent=5 // pred_check
      _
    $region10: #{classification_model_guest_forward.1} parent=5 // pred_check_branch
      %138 = sbr.rel (%p135) target = $region12
    $region11: #{classification_model_guest_forward.1} parent=5 // pred_region
      %s139 = ssub.s32 %s10, 1
      // Predicated region
      $region13: #{classification_model_guest_forward.1} parent=11 // pred_check
        %p140 = pneg %p57
      $region14: #{classification_model_guest_forward.1} parent=11 // pred_check_branch
        %142 = sbr.rel (%p140) target = $region16
      $region15: #{classification_model_guest_forward.1} parent=11 // pred_region
        _
      $region16: #{classification_model_guest_forward.1} parent=11 // pred_fallthru
        _
      // Predicated region
      $region17: #{classification_model_guest_forward.1} parent=11 // pred_check
        %p143 = pneg %p78
      $region18: #{classification_model_guest_forward.1} parent=11 // pred_check_branch
        %145 = sbr.rel (%p143) target = $region20
      $region19: #{classification_model_guest_forward.1} parent=11 // pred_region
        _
      $region20: #{classification_model_guest_forward.1} parent=11 // pred_fallthru
        _
      // Predicated region
      $region21: #{classification_model_guest_forward.1} parent=11 // pred_check
        %p146 = pneg %p99
      $region22: #{classification_model_guest_forward.1} parent=11 // pred_check_branch
        %148 = sbr.rel (%p146) target = $region24
      $region23: #{classification_model_guest_forward.1} parent=11 // pred_region
        _
      $region24: #{classification_model_guest_forward.1} parent=11 // pred_fallthru
        _
    $region12: #{classification_model_guest_forward.1} parent=5 // pred_fallthru
      _
    %p149 = scmp.lt.s32.totalorder %s10, 2
    // Predicated region
    $region25: #{classification_model_guest_forward.1} parent=5 // pred_check
      %p150 = pneg %p149
    $region26: #{classification_model_guest_forward.1} parent=5 // pred_check_branch
      %152 = sbr.rel (%p150) target = $region28
    $region27: #{classification_model_guest_forward.1} parent=5 // pred_region
      // Predicated region
      $region29: #{classification_model_guest_forward.1} parent=27 // pred_check
        %p153 = pneg %p30
      $region30: #{classification_model_guest_forward.1} parent=27 // pred_check_branch
        %155 = sbr.rel (%p153) target = $region32
      $region31: #{classification_model_guest_forward.1} parent=27 // pred_region
        %p156 = scmp.lt.s32.totalorder %s10, 1
        %s157 = scalar_select %p156, %s10, 1
        %s158 = smul.addr %s157, 3
        %s159 = smul.addr %s158, 8
        %s160 = scalar_lea.vmem %s0, %s159
      $region32: #{classification_model_guest_forward.1} parent=27 // pred_fallthru
        _
    $region28: #{classification_model_guest_forward.1} parent=5 // pred_fallthru
      _
    %p161 = scmp.le.s32.totalorder 1, %s10
    %p162 = scmp.lt.s32.totalorder %s10, 3
    %p163 = pnand %p161, %p162
    %p164 = pneg %p163
    // Predicated region
    $region33: #{classification_model_guest_forward.1} parent=5 // pred_check
      _
    $region34: #{classification_model_guest_forward.1} parent=5 // pred_check_branch
      %166 = sbr.rel (%p163) target = $region36
    $region35: #{classification_model_guest_forward.1} parent=5 // pred_region
      %s167 = ssub.s32 %s10, 1
      %p168 = scmp.lt.s32.totalorder %s15, 1
      %s169 = scalar_select %p168, %s15, 1
      %s170 = smul.addr %s169, 3
      %s171 = smul.addr %s170, 8
      %s172 = scalar_lea.vmem %s0, %s171
      %p173 = pneg %p36
      %p174 = pneg %p33
      %p175 = pneg %p57
      %p176 = pneg %p54
      %p177 = pneg %p78
      %p178 = pneg %p75
      %p179 = pneg %p99
      %p180 = pneg %p96
      %p181 = pneg %p125
      %p182 = pneg %p122
      %p183 = scmp.lt.s32.totalorder %s15, 1
      %s184 = scalar_select %p183, %s15, 1
      %s185 = smul.addr %s184, 2
      %s186 = smul.addr %s185, 8
      %s187 = scalar_lea.vmem %s4, %s186
      %p188 = scmp.lt.s32.totalorder %s15, 1
      %s189 = scalar_select %p188, %s15, 1
      %s190 = smul.addr %s189, 3
      %s191 = smul.addr %s190, 8
      %s192 = scalar_lea.vmem %s0, %s191
      %p193 = scmp.lt.s32.totalorder %s15, 1
      %s194 = scalar_select %p193, %s15, 1
      %s195 = smul.addr %s194, 2
      %s196 = smul.addr %s195, 8
      %s197 = scalar_lea.vmem %s4, %s196
      %v198 = vld [vmem:[%s192] sm:$0xff]
      %v199 = vld [vmem:[%s192 + $0x8] sm:$0xff]
      %v200 = vld [vmem:[%s1] sm:$0xff]
      %v201 = vld [vmem:[%s192] sm:$0xff]
      %v202 = vld [vmem:[%s192 + $0x8] sm:$0xff]
      %v203 = vld [vmem:[%s192 + $0x10] sm:$0xff]
      %s204 = scalar_lea.vmem %s1, 8
      %v205 = vld [vmem:[%s204] sm:$0xff]
      %s206 = scalar_lea.vmem %s1, 16
      %v207 = vld [vmem:[%s206] sm:$0xff]
      %s208 = scalar_lea.vmem %s1, 24
      %v209 = vld [vmem:[%s208] sm:$0xff]
      %213 = vrot.lane.b32.xlu0 %v201, 112
      %v214 = vpop.permute.xlu0 %213
      %215 = vrot.lane.b32.xlu0 %v202, 112
      %v216 = vpop.permute.xlu0 %215
      %217 = vrot.lane.b32.xlu0 %v203, 112
      %v218 = vpop.permute.xlu0 %217
      %vm219 = vcmask 916480
      %v220 = vsel %vm219, %v214, %v216
      %v221 = vsel %vm219, %v216, %v218
      %vm224 = vcmask 64512
      %v226 = vsel %vm224, %v209, 0
      %228 = vmatpush.msra.mxu0 0.0
      %229 = vmatpush.msra.mxu0 0.0
      %230 = vmatpush.msra.mxu0 0.0
      %231 = vmatpush.msra.mxu0 0.0
      %232 = vmatpush.msra.mxu0 0.0
      %233 = vmatpush.msra.mxu0 0.0
      %234 = vmatpush.msra.mxu0 0.0
      %235 = vmatpush.msra.mxu0 0.0
      %236 = vmatpush.msra.mxu0 0.0
      %237 = vmatpush.msra.mxu0 0.0
      %238 = vmatpush.msra.mxu0 0.0
      %239 = vmatpush.msra.mxu0 0.0
      %240 = vmatpush.msra.mxu0 0.0
      %241 = vmatpush.msra.mxu0 0.0
      %242 = vmatpush.msra.mxu0 0.0
      %243 = vmatpush.msra.mxu0 %v220
      %244 = vmatmul.f32.gmra.mxu0 %v226
      %v245 = vpop.f32.mrf.mxu0
      %v246 = vadd.f32 0.0, %v245
      %247 = vdwg.mxu0
      %248 = vmatpush.msra.mxu0 0.0
      %249 = vmatpush.msra.mxu0 0.0
      %250 = vmatpush.msra.mxu0 0.0
      %251 = vmatpush.msra.mxu0 0.0
      %252 = vmatpush.msra.mxu0 0.0
      %253 = vmatpush.msra.mxu0 0.0
      %254 = vmatpush.msra.mxu0 0.0
      %255 = vmatpush.msra.mxu0 0.0
      %256 = vmatpush.msra.mxu0 0.0
      %257 = vmatpush.msra.mxu0 0.0
      %258 = vmatpush.msra.mxu0 0.0
      %259 = vmatpush.msra.mxu0 0.0
      %260 = vmatpush.msra.mxu0 0.0
      %261 = vmatpush.msra.mxu0 0.0
      %262 = vmatpush.msra.mxu0 0.0
      %263 = vmatpush.msra.mxu0 %v221
      %264 = vmatmul.f32.gmra.mxu0 %v226
      %v265 = vpop.f32.mrf.mxu0
      %v266 = vadd.f32 0.0, %v265
      %267 = vdwg.mxu0
      %v269 = vsel %vm224, %v200, 0
      %271 = vmatpush.msra.mxu0 0.0
      %272 = vmatpush.msra.mxu0 0.0
      %273 = vmatpush.msra.mxu0 0.0
      %274 = vmatpush.msra.mxu0 0.0
      %275 = vmatpush.msra.mxu0 0.0
      %276 = vmatpush.msra.mxu0 0.0
      %277 = vmatpush.msra.mxu0 0.0
      %278 = vmatpush.msra.mxu0 0.0
      %279 = vmatpush.msra.mxu0 0.0
      %280 = vmatpush.msra.mxu0 0.0
      %281 = vmatpush.msra.mxu0 0.0
      %282 = vmatpush.msra.mxu0 0.0
      %283 = vmatpush.msra.mxu0 0.0
      %284 = vmatpush.msra.mxu0 0.0
      %285 = vmatpush.msra.mxu0 0.0
      %286 = vmatpush.msra.mxu0 %v198
      %287 = vmatmul.f32.gmra.mxu0 %v269
      %v288 = vpop.f32.mrf.mxu0
      %v289 = vadd.f32 %v246, %v288
      %290 = vdwg.mxu0
      %291 = vmatpush.msra.mxu0 0.0
      %292 = vmatpush.msra.mxu0 0.0
      %293 = vmatpush.msra.mxu0 0.0
      %294 = vmatpush.msra.mxu0 0.0
      %295 = vmatpush.msra.mxu0 0.0
      %296 = vmatpush.msra.mxu0 0.0
      %297 = vmatpush.msra.mxu0 0.0
      %298 = vmatpush.msra.mxu0 0.0
      %299 = vmatpush.msra.mxu0 0.0
      %300 = vmatpush.msra.mxu0 0.0
      %301 = vmatpush.msra.mxu0 0.0
      %302 = vmatpush.msra.mxu0 0.0
      %303 = vmatpush.msra.mxu0 0.0
      %304 = vmatpush.msra.mxu0 0.0
      %305 = vmatpush.msra.mxu0 0.0
      %306 = vmatpush.msra.mxu0 %v199
      %307 = vmatmul.f32.gmra.mxu0 %v269
      %v308 = vpop.f32.mrf.mxu0
      %v309 = vadd.f32 %v266, %v308
      %310 = vdwg.mxu0
      %s311 = scalar_lea.vmem %s1, 32
      %v312 = vld [vmem:[%s311] sm:$0xff]
      %313 = vrot.lane.b32.xlu0 %v201, 111
      %v314 = vpop.permute.xlu0 %313
      %315 = vrot.lane.b32.xlu0 %v202, 111
      %v316 = vpop.permute.xlu0 %315
      %317 = vrot.lane.b32.xlu0 %v203, 111
      %v318 = vpop.permute.xlu0 %317
      %vm319 = vcmask 908288
      %v320 = vsel %vm319, %v314, %v316
      %v321 = vsel %vm319, %v316, %v318
      %v325 = vsel %vm224, %v312, 0
      %327 = vmatpush.msra.mxu0 0.0
      %328 = vmatpush.msra.mxu0 0.0
      %329 = vmatpush.msra.mxu0 0.0
      %330 = vmatpush.msra.mxu0 0.0
      %331 = vmatpush.msra.mxu0 0.0
      %332 = vmatpush.msra.mxu0 0.0
      %333 = vmatpush.msra.mxu0 0.0
      %334 = vmatpush.msra.mxu0 0.0
      %335 = vmatpush.msra.mxu0 0.0
      %336 = vmatpush.msra.mxu0 0.0
      %337 = vmatpush.msra.mxu0 0.0
      %338 = vmatpush.msra.mxu0 0.0
      %339 = vmatpush.msra.mxu0 0.0
      %340 = vmatpush.msra.mxu0 0.0
      %341 = vmatpush.msra.mxu0 0.0
      %342 = vmatpush.msra.mxu0 %v320
      %343 = vmatmul.f32.gmra.mxu0 %v325
      %v344 = vpop.f32.mrf.mxu0
      %v345 = vadd.f32 0.0, %v344
      %346 = vdwg.mxu0
      %347 = vmatpush.msra.mxu0 0.0
      %348 = vmatpush.msra.mxu0 0.0
      %349 = vmatpush.msra.mxu0 0.0
      %350 = vmatpush.msra.mxu0 0.0
      %351 = vmatpush.msra.mxu0 0.0
      %352 = vmatpush.msra.mxu0 0.0
      %353 = vmatpush.msra.mxu0 0.0
      %354 = vmatpush.msra.mxu0 0.0
      %355 = vmatpush.msra.mxu0 0.0
      %356 = vmatpush.msra.mxu0 0.0
      %357 = vmatpush.msra.mxu0 0.0
      %358 = vmatpush.msra.mxu0 0.0
      %359 = vmatpush.msra.mxu0 0.0
      %360 = vmatpush.msra.mxu0 0.0
      %361 = vmatpush.msra.mxu0 0.0
      %362 = vmatpush.msra.mxu0 %v321
      %363 = vmatmul.f32.gmra.mxu0 %v325
      %v364 = vpop.f32.mrf.mxu0
      %v365 = vadd.f32 0.0, %v364
      %366 = vdwg.mxu0
      %367 = vrot.lane.b32.xlu0 %v201, 127
      %v368 = vpop.permute.xlu0 %367
      %369 = vrot.lane.b32.xlu0 %v202, 127
      %v370 = vpop.permute.xlu0 %369
      %371 = vrot.lane.b32.xlu0 %v203, 127
      %v372 = vpop.permute.xlu0 %371
      %vm373 = vcmask 1039360
      %v374 = vsel %vm373, %v368, %v370
      %v375 = vsel %vm373, %v370, %v372
      %v379 = vsel %vm224, %v205, 0
      %381 = vmatpush.msra.mxu0 0.0
      %382 = vmatpush.msra.mxu0 0.0
      %383 = vmatpush.msra.mxu0 0.0
      %384 = vmatpush.msra.mxu0 0.0
      %385 = vmatpush.msra.mxu0 0.0
      %386 = vmatpush.msra.mxu0 0.0
      %387 = vmatpush.msra.mxu0 0.0
      %388 = vmatpush.msra.mxu0 0.0
      %389 = vmatpush.msra.mxu0 0.0
      %390 = vmatpush.msra.mxu0 0.0
      %391 = vmatpush.msra.mxu0 0.0
      %392 = vmatpush.msra.mxu0 0.0
      %393 = vmatpush.msra.mxu0 0.0
      %394 = vmatpush.msra.mxu0 0.0
      %395 = vmatpush.msra.mxu0 0.0
      %396 = vmatpush.msra.mxu0 %v374
      %397 = vmatmul.f32.gmra.mxu0 %v379
      %v398 = vpop.f32.mrf.mxu0
      %v399 = vadd.f32 %v345, %v398
      %400 = vdwg.mxu0
      %401 = vmatpush.msra.mxu0 0.0
      %402 = vmatpush.msra.mxu0 0.0
      %403 = vmatpush.msra.mxu0 0.0
      %404 = vmatpush.msra.mxu0 0.0
      %405 = vmatpush.msra.mxu0 0.0
      %406 = vmatpush.msra.mxu0 0.0
      %407 = vmatpush.msra.mxu0 0.0
      %408 = vmatpush.msra.mxu0 0.0
      %409 = vmatpush.msra.mxu0 0.0
      %410 = vmatpush.msra.mxu0 0.0
      %411 = vmatpush.msra.mxu0 0.0
      %412 = vmatpush.msra.mxu0 0.0
      %413 = vmatpush.msra.mxu0 0.0
      %414 = vmatpush.msra.mxu0 0.0
      %415 = vmatpush.msra.mxu0 0.0
      %416 = vmatpush.msra.mxu0 %v375
      %417 = vmatmul.f32.gmra.mxu0 %v379
      %v418 = vpop.f32.mrf.mxu0
      %v419 = vadd.f32 %v365, %v418
      %420 = vdwg.mxu0
      %s421 = scalar_lea.vmem %s1, 40
      %v422 = vld [vmem:[%s421] sm:$0xff]
      %423 = vrot.lane.b32.xlu0 %v201, 110
      %v424 = vpop.permute.xlu0 %423
      %425 = vrot.lane.b32.xlu0 %v202, 110
      %v426 = vpop.permute.xlu0 %425
      %427 = vrot.lane.b32.xlu0 %v203, 110
      %v428 = vpop.permute.xlu0 %427
      %vm429 = vcmask 900096
      %v430 = vsel %vm429, %v424, %v426
      %v431 = vsel %vm429, %v426, %v428
      %v435 = vsel %vm224, %v422, 0
      %437 = vmatpush.msra.mxu0 0.0
      %438 = vmatpush.msra.mxu0 0.0
      %439 = vmatpush.msra.mxu0 0.0
      %440 = vmatpush.msra.mxu0 0.0
      %441 = vmatpush.msra.mxu0 0.0
      %442 = vmatpush.msra.mxu0 0.0
      %443 = vmatpush.msra.mxu0 0.0
      %444 = vmatpush.msra.mxu0 0.0
      %445 = vmatpush.msra.mxu0 0.0
      %446 = vmatpush.msra.mxu0 0.0
      %447 = vmatpush.msra.mxu0 0.0
      %448 = vmatpush.msra.mxu0 0.0
      %449 = vmatpush.msra.mxu0 0.0
      %450 = vmatpush.msra.mxu0 0.0
      %451 = vmatpush.msra.mxu0 0.0
      %452 = vmatpush.msra.mxu0 %v430
      %453 = vmatmul.f32.gmra.mxu0 %v435
      %v454 = vpop.f32.mrf.mxu0
      %v455 = vadd.f32 0.0, %v454
      %456 = vdwg.mxu0
      %457 = vmatpush.msra.mxu0 0.0
      %458 = vmatpush.msra.mxu0 0.0
      %459 = vmatpush.msra.mxu0 0.0
      %460 = vmatpush.msra.mxu0 0.0
      %461 = vmatpush.msra.mxu0 0.0
      %462 = vmatpush.msra.mxu0 0.0
      %463 = vmatpush.msra.mxu0 0.0
      %464 = vmatpush.msra.mxu0 0.0
      %465 = vmatpush.msra.mxu0 0.0
      %466 = vmatpush.msra.mxu0 0.0
      %467 = vmatpush.msra.mxu0 0.0
      %468 = vmatpush.msra.mxu0 0.0
      %469 = vmatpush.msra.mxu0 0.0
      %470 = vmatpush.msra.mxu0 0.0
      %471 = vmatpush.msra.mxu0 0.0
      %472 = vmatpush.msra.mxu0 %v431
      %473 = vmatmul.f32.gmra.mxu0 %v435
      %v474 = vpop.f32.mrf.mxu0
      %v475 = vadd.f32 0.0, %v474
      %476 = vdwg.mxu0
      %477 = vrot.lane.b32.xlu0 %v201, 126
      %v478 = vpop.permute.xlu0 %477
      %479 = vrot.lane.b32.xlu0 %v202, 126
      %v480 = vpop.permute.xlu0 %479
      %481 = vrot.lane.b32.xlu0 %v203, 126
      %v482 = vpop.permute.xlu0 %481
      %vm483 = vcmask 1031168
      %v484 = vsel %vm483, %v478, %v480
      %v485 = vsel %vm483, %v480, %v482
      %v489 = vsel %vm224, %v207, 0
      %491 = vmatpush.msra.mxu0 0.0
      %492 = vmatpush.msra.mxu0 0.0
      %493 = vmatpush.msra.mxu0 0.0
      %494 = vmatpush.msra.mxu0 0.0
      %495 = vmatpush.msra.mxu0 0.0
      %496 = vmatpush.msra.mxu0 0.0
      %497 = vmatpush.msra.mxu0 0.0
      %498 = vmatpush.msra.mxu0 0.0
      %499 = vmatpush.msra.mxu0 0.0
      %500 = vmatpush.msra.mxu0 0.0
      %501 = vmatpush.msra.mxu0 0.0
      %502 = vmatpush.msra.mxu0 0.0
      %503 = vmatpush.msra.mxu0 0.0
      %504 = vmatpush.msra.mxu0 0.0
      %505 = vmatpush.msra.mxu0 0.0
      %506 = vmatpush.msra.mxu0 %v484
      %507 = vmatmul.f32.gmra.mxu0 %v489
      %v508 = vpop.f32.mrf.mxu0
      %v509 = vadd.f32 %v455, %v508
      %510 = vdwg.mxu0
      %511 = vmatpush.msra.mxu0 0.0
      %512 = vmatpush.msra.mxu0 0.0
      %513 = vmatpush.msra.mxu0 0.0
      %514 = vmatpush.msra.mxu0 0.0
      %515 = vmatpush.msra.mxu0 0.0
      %516 = vmatpush.msra.mxu0 0.0
      %517 = vmatpush.msra.mxu0 0.0
      %518 = vmatpush.msra.mxu0 0.0
      %519 = vmatpush.msra.mxu0 0.0
      %520 = vmatpush.msra.mxu0 0.0
      %521 = vmatpush.msra.mxu0 0.0
      %522 = vmatpush.msra.mxu0 0.0
      %523 = vmatpush.msra.mxu0 0.0
      %524 = vmatpush.msra.mxu0 0.0
      %525 = vmatpush.msra.mxu0 0.0
      %526 = vmatpush.msra.mxu0 %v485
      %527 = vmatmul.f32.gmra.mxu0 %v489
      %v528 = vpop.f32.mrf.mxu0
      %v529 = vadd.f32 %v475, %v528
      %530 = vdwg.mxu0
      %s531 = scalar_lea.vmem %s1, 48
      %v532 = vld [vmem:[%s531] sm:$0xff]
      %533 = vrot.lane.b32.xlu0 %v201, 96
      %v534 = vpop.permute.xlu0 %533
      %535 = vrot.lane.b32.xlu0 %v202, 96
      %v536 = vpop.permute.xlu0 %535
      %537 = vrot.lane.b32.xlu0 %v203, 96
      %v538 = vpop.permute.xlu0 %537
      %vm539 = vcmask 785408
      %v540 = vsel %vm539, %v534, %v536
      %v541 = vsel %vm539, %v536, %v538
      %v545 = vsel %vm224, %v532, 0
      %547 = vmatpush.msra.mxu0 0.0
      %548 = vmatpush.msra.mxu0 0.0
      %549 = vmatpush.msra.mxu0 0.0
      %550 = vmatpush.msra.mxu0 0.0
      %551 = vmatpush.msra.mxu0 0.0
      %552 = vmatpush.msra.mxu0 0.0
      %553 = vmatpush.msra.mxu0 0.0
      %554 = vmatpush.msra.mxu0 0.0
      %555 = vmatpush.msra.mxu0 0.0
      %556 = vmatpush.msra.mxu0 0.0
      %557 = vmatpush.msra.mxu0 0.0
      %558 = vmatpush.msra.mxu0 0.0
      %559 = vmatpush.msra.mxu0 0.0
      %560 = vmatpush.msra.mxu0 0.0
      %561 = vmatpush.msra.mxu0 0.0
      %562 = vmatpush.msra.mxu0 %v540
      %563 = vmatmul.f32.gmra.mxu0 %v545
      %v564 = vpop.f32.mrf.mxu0
      %v565 = vadd.f32 0.0, %v564
      %566 = vdwg.mxu0
      %567 = vmatpush.msra.mxu0 0.0
      %568 = vmatpush.msra.mxu0 0.0
      %569 = vmatpush.msra.mxu0 0.0
      %570 = vmatpush.msra.mxu0 0.0
      %571 = vmatpush.msra.mxu0 0.0
      %572 = vmatpush.msra.mxu0 0.0
      %573 = vmatpush.msra.mxu0 0.0
      %574 = vmatpush.msra.mxu0 0.0
      %575 = vmatpush.msra.mxu0 0.0
      %576 = vmatpush.msra.mxu0 0.0
      %577 = vmatpush.msra.mxu0 0.0
      %578 = vmatpush.msra.mxu0 0.0
      %579 = vmatpush.msra.mxu0 0.0
      %580 = vmatpush.msra.mxu0 0.0
      %581 = vmatpush.msra.mxu0 0.0
      %582 = vmatpush.msra.mxu0 %v541
      %583 = vmatmul.f32.gmra.mxu0 %v545
      %v584 = vpop.f32.mrf.mxu0
      %v585 = vadd.f32 0.0, %v584
      %586 = vdwg.mxu0
      %v587 = vadd.f32 %v289, %v565
      %v588 = vadd.f32 %v309, %v585
      %s589 = scalar_lea.vmem %s1, 56
      %v590 = vld [vmem:[%s589] sm:$0xff]
      %591 = vrot.lane.b32.xlu0 %v201, 95
      %v592 = vpop.permute.xlu0 %591
      %593 = vrot.lane.b32.xlu0 %v202, 95
      %v594 = vpop.permute.xlu0 %593
      %595 = vrot.lane.b32.xlu0 %v203, 95
      %v596 = vpop.permute.xlu0 %595
      %vm597 = vcmask 777216
      %v598 = vsel %vm597, %v592, %v594
      %v599 = vsel %vm597, %v594, %v596
      %v603 = vsel %vm224, %v590, 0
      %605 = vmatpush.msra.mxu0 0.0
      %606 = vmatpush.msra.mxu0 0.0
      %607 = vmatpush.msra.mxu0 0.0
      %608 = vmatpush.msra.mxu0 0.0
      %609 = vmatpush.msra.mxu0 0.0
      %610 = vmatpush.msra.mxu0 0.0
      %611 = vmatpush.msra.mxu0 0.0
      %612 = vmatpush.msra.mxu0 0.0
      %613 = vmatpush.msra.mxu0 0.0
      %614 = vmatpush.msra.mxu0 0.0
      %615 = vmatpush.msra.mxu0 0.0
      %616 = vmatpush.msra.mxu0 0.0
      %617 = vmatpush.msra.mxu0 0.0
      %618 = vmatpush.msra.mxu0 0.0
      %619 = vmatpush.msra.mxu0 0.0
      %620 = vmatpush.msra.mxu0 %v598
      %621 = vmatmul.f32.gmra.mxu0 %v603
      %v622 = vpop.f32.mrf.mxu0
      %v623 = vadd.f32 0.0, %v622
      %624 = vdwg.mxu0
      %625 = vmatpush.msra.mxu0 0.0
      %626 = vmatpush.msra.mxu0 0.0
      %627 = vmatpush.msra.mxu0 0.0
      %628 = vmatpush.msra.mxu0 0.0
      %629 = vmatpush.msra.mxu0 0.0
      %630 = vmatpush.msra.mxu0 0.0
      %631 = vmatpush.msra.mxu0 0.0
      %632 = vmatpush.msra.mxu0 0.0
      %633 = vmatpush.msra.mxu0 0.0
      %634 = vmatpush.msra.mxu0 0.0
      %635 = vmatpush.msra.mxu0 0.0
      %636 = vmatpush.msra.mxu0 0.0
      %637 = vmatpush.msra.mxu0 0.0
      %638 = vmatpush.msra.mxu0 0.0
      %639 = vmatpush.msra.mxu0 0.0
      %640 = vmatpush.msra.mxu0 %v599
      %641 = vmatmul.f32.gmra.mxu0 %v603
      %v642 = vpop.f32.mrf.mxu0
      %v643 = vadd.f32 0.0, %v642
      %644 = vdwg.mxu0
      %v645 = vadd.f32 %v399, %v623
      %v646 = vadd.f32 %v419, %v643
      %s647 = scalar_lea.vmem %s1, 64
      %v648 = vld [vmem:[%s647] sm:$0xff]
      %649 = vrot.lane.b32.xlu0 %v201, 94
      %v650 = vpop.permute.xlu0 %649
      %651 = vrot.lane.b32.xlu0 %v202, 94
      %v652 = vpop.permute.xlu0 %651
      %653 = vrot.lane.b32.xlu0 %v203, 94
      %v654 = vpop.permute.xlu0 %653
      %vm655 = vcmask 769024
      %v656 = vsel %vm655, %v650, %v652
      %v657 = vsel %vm655, %v652, %v654
      %v661 = vsel %vm224, %v648, 0
      %663 = vmatpush.msra.mxu0 0.0
      %664 = vmatpush.msra.mxu0 0.0
      %665 = vmatpush.msra.mxu0 0.0
      %666 = vmatpush.msra.mxu0 0.0
      %667 = vmatpush.msra.mxu0 0.0
      %668 = vmatpush.msra.mxu0 0.0
      %669 = vmatpush.msra.mxu0 0.0
      %670 = vmatpush.msra.mxu0 0.0
      %671 = vmatpush.msra.mxu0 0.0
      %672 = vmatpush.msra.mxu0 0.0
      %673 = vmatpush.msra.mxu0 0.0
      %674 = vmatpush.msra.mxu0 0.0
      %675 = vmatpush.msra.mxu0 0.0
      %676 = vmatpush.msra.mxu0 0.0
      %677 = vmatpush.msra.mxu0 0.0
      %678 = vmatpush.msra.mxu0 %v656
      %679 = vmatmul.f32.gmra.mxu0 %v661
      %v680 = vpop.f32.mrf.mxu0
      %v681 = vadd.f32 0.0, %v680
      %682 = vdwg.mxu0
      %683 = vmatpush.msra.mxu0 0.0
      %684 = vmatpush.msra.mxu0 0.0
      %685 = vmatpush.msra.mxu0 0.0
      %686 = vmatpush.msra.mxu0 0.0
      %687 = vmatpush.msra.mxu0 0.0
      %688 = vmatpush.msra.mxu0 0.0
      %689 = vmatpush.msra.mxu0 0.0
      %690 = vmatpush.msra.mxu0 0.0
      %691 = vmatpush.msra.mxu0 0.0
      %692 = vmatpush.msra.mxu0 0.0
      %693 = vmatpush.msra.mxu0 0.0
      %694 = vmatpush.msra.mxu0 0.0
      %695 = vmatpush.msra.mxu0 0.0
      %696 = vmatpush.msra.mxu0 0.0
      %697 = vmatpush.msra.mxu0 0.0
      %698 = vmatpush.msra.mxu0 %v657
      %699 = vmatmul.f32.gmra.mxu0 %v661
      %v700 = vpop.f32.mrf.mxu0
      %v701 = vadd.f32 0.0, %v700
      %702 = vdwg.mxu0
      %v703 = vadd.f32 %v509, %v681
      %v704 = vadd.f32 %v529, %v701
      %v705 = vld [vmem:[%s3] ss:$2 sm:$0x3]
      %v707 = vperm.slane %v705, 0
      %v708 = vperm.slane %v705, 1
      %v711 = vmul.f32 %v587, %v707
      %v712 = vmul.f32 %v588, %v708
      %v713 = vadd.f32 %v645, %v711
      %v714 = vadd.f32 %v646, %v712
      %s715 = scalar_lea.vmem %s3, 1
      %v716 = vld [vmem:[%s715] ss:$2 sm:$0x3]
      %v718 = vperm.slane %v716, 0
      %v719 = vperm.slane %v716, 1
      %v722 = vmul.f32 %v703, %v718
      %v723 = vmul.f32 %v704, %v719
      %v724 = vadd.f32 %v713, %v722
      %v725 = vadd.f32 %v714, %v723
      %v726 = vld [vmem:[%s2] sm:$0xff]
      %728 = vset.pattern.permute.xlu0 0
      %729 = vperm.xlu0 %728, %v726
      %v730 = vpop.permute.xlu0 %729
      %v732 = vadd.f32 %v724, %v730
      %v733 = vadd.f32 %v725, %v730
      %v734 = vmax.f32 %v732, 0.0
      %v735 = vmax.f32 %v733, 0.0
      %736 = vst [vmem:[%s197] sm:$0xff] %v734
      %737 = vst [vmem:[%s197 + $0x8] sm:$0xff] %v735
      %p738 = scmp.lt.s32.totalorder %s15, 1
      %s739 = scalar_select %p738, %s15, 1
      %s740 = smul.addr %s739, 2
      %s741 = smul.addr %s740, 8
      %s742 = scalar_lea.vmem %s4, %s741
      // Predicated region
      $region37: #{classification_model_guest_forward.1} parent=35 // pred_check
        %p743 = pneg %p122
      $region38: #{classification_model_guest_forward.1} parent=35 // pred_check_branch
        %745 = sbr.rel (%p743) target = $region40
      $region39: #{classification_model_guest_forward.1} parent=35 // pred_region
        _
      $region40: #{classification_model_guest_forward.1} parent=35 // pred_fallthru
        _
    $region36: #{classification_model_guest_forward.1} parent=5 // pred_fallthru
      _
    %p746 = scmp.le.s32.totalorder 2, %s10
    // Predicated region
    $region41: #{classification_model_guest_forward.1} parent=5 // pred_check
      %p747 = pneg %p746
    $region42: #{classification_model_guest_forward.1} parent=5 // pred_check_branch
      %749 = sbr.rel (%p747) target = $region44
    $region43: #{classification_model_guest_forward.1} parent=5 // pred_region
      %s750 = ssub.s32 %s10, 2
      // Predicated region
      $region45: #{classification_model_guest_forward.1} parent=43 // pred_check
        %p751 = pneg %p128
      $region46: #{classification_model_guest_forward.1} parent=43 // pred_check_branch
        %753 = sbr.rel (%p751) target = $region48
      $region47: #{classification_model_guest_forward.1} parent=43 // pred_region
        %p754 = scmp.lt.s32.totalorder %s16, 1
        %s755 = scalar_select %p754, %s16, 1
        %s756 = smul.addr %s755, 2
        %s757 = smul.addr %s756, 8
        %s758 = scalar_lea.vmem %s4, %s757
      $region48: #{classification_model_guest_forward.1} parent=43 // pred_fallthru
        _
    $region44: #{classification_model_guest_forward.1} parent=5 // pred_fallthru
      _
  $region6: #{classification_model_guest_forward.1} parent=0 // loop_footer
    %s14 = sadd.s32 1, %s10
  $region7: #{classification_model_guest_forward.1} parent=0 // loop_footer_branch
    %9 = sbr.rel target = $region3
  $region8: #{classification_model_guest_forward.1} parent=0 // loop_exit
    _

</llo_original>
